<compile_context>
chip_gen: v7x
topology: tpu7x:2x2x1
jax: 0.10.0
libtpu: 0.0.40
codegen_flags: <defaults>
</compile_context>

<pallas_src>
import functools

import jax
import jax.numpy as jnp
import numpy as np
from jax.experimental import pallas as pl
from jax.experimental.pallas import tpu as pltpu

TAU = 1.75                 # LIF time constant of every MultiStepLIFNode.
INV_TAU = 1.0 / TAU        # multiply instead of divide (single VALU op).


def _lif(x, mem, threshold):
    """Hard-reset LIF step (spikingjelly, decay_input=True, v_reset=0)."""
    h = mem + (x - mem) * INV_TAU
    s = (h >= threshold).astype(jnp.float32)
    return s, h * (1.0 - s)


def _attention_kernel(batch,
                      x_ref, wqkv_ref, wp_ref, sqkv_ref, sp_ref,
                      bmask_ref, hmask_ref, o_ref,
                      m_proj_ref, m_qkv_ref, m_attn_ref):
    f32, bf16 = jnp.float32, jnp.bfloat16
    C, BN = x_ref.shape            # x block laid out as [C, B*N]

    # Zero the persistent LIF membranes on the first timestep only.
    @pl.when(pl.program_id(0) == 0)
    def _():
        m_proj_ref[...] = jnp.zeros_like(m_proj_ref)
        m_qkv_ref[...] = jnp.zeros_like(m_qkv_ref)
        m_attn_ref[...] = jnp.zeros_like(m_attn_ref)

    # proj_lif on the raw input.
    xs, m_proj = _lif(x_ref[...], m_proj_ref[...], 1.0)
    m_proj_ref[...] = m_proj

    # Fused q/k/v 1x1 conv + folded BN (one MXU matmul), then the q/k/v LIFs
    # (their membranes are stacked into one [3C, BN] buffer).
    qkv_pre = jnp.dot(wqkv_ref[...], xs.astype(bf16),
                      preferred_element_type=f32) + sqkv_ref[...]
    qkv_s, m_qkv = _lif(qkv_pre, m_qkv_ref[...], 1.0)
    m_qkv_ref[...] = m_qkv
    q_s, k_s, v_s = qkv_s[:C], qkv_s[C:2 * C], qkv_s[2 * C:]

    # Batch-blocked, softmax-free attention.  Mask while spikes are still f32
    # (native VPU path on v5e), cast to bf16 once for the MXU.
    bmask = bmask_ref[...]                                        # [B*C, BN]
    k_blk = (jnp.concatenate([k_s] * batch, axis=0) * bmask).astype(bf16)
    q_blk = (jnp.concatenate([q_s] * batch, axis=0) * bmask).astype(bf16)

    # kv[c, b*C+c1] = sum_{n in batch b} v[c, n] * k[c1, n]   -> [C, B*C]
    kv = jnp.einsum("cm,em->ce", v_s.astype(bf16), k_blk,
                    preferred_element_type=f32)
    # hmask carries both the head block-diagonal structure and the 0.125 scale
    # (exact in bf16 while kv's integer entries <= 256, i.e. N <= 256).
    kv = (kv * hmask_ref[...]).astype(bf16)
    # y[c, n] = sum_e kv[c, e] * q_blk[e, n]  -- native [M,K]x[K,N] MXU shape.
    y = jnp.einsum("ce,en->cn", kv, q_blk, preferred_element_type=f32)

    # attn_lif (v_threshold = 0.5)
    ys, m_attn = _lif(y, m_attn_ref[...], 0.5)
    m_attn_ref[...] = m_attn

    # proj_conv + proj_bn (conv bias folded into the per-channel shift).
    o_ref[...] = jnp.dot(wp_ref[...], ys.astype(bf16),
                         preferred_element_type=f32) + sp_ref[...]


def fold_bn_into_conv(wq, wk, wv, wp, proj_bias, q_bn, k_bn, v_bn, p_bn):
    """Fold inference-mode BatchNorm1d into the 1x1 convs.

    Each *_bn is a (scale, shift) pair with scale = gamma / sqrt(var + eps) and
    shift = beta - mean * scale.  Returns the stacked q/k/v weight (bf16),
    folded proj weight (bf16) and the per-channel additive shifts (f32).
    """
    wqkv = jnp.concatenate([q_bn[0][:, None] * wq,
                            k_bn[0][:, None] * wk,
                            v_bn[0][:, None] * wv], axis=0)
    shift_qkv = jnp.concatenate([q_bn[1], k_bn[1], v_bn[1]], axis=0)
    wp_f = p_bn[0][:, None] * wp
    shift_p = p_bn[1] + p_bn[0] * proj_bias
    return (wqkv.astype(jnp.bfloat16), wp_f.astype(jnp.bfloat16),
            shift_qkv.astype(jnp.float32), shift_p.astype(jnp.float32))


def spiking_self_attention(x5d, wqkv, wp, shift_qkv, shift_p, num_heads):
    T, B, C, H, W = x5d.shape
    N = H * W
    BN = B * N
    d = C // num_heads
    C3 = 3 * C

    # [T,B,C,H,W] -> [T, C, B*N]: lane-dense layout (all batches on the lanes).
    x = (x5d.reshape(T, B, C, N).transpose(0, 2, 1, 3)
         .reshape(T, C, BN).astype(jnp.float32))

    # Loop-invariant masks / lane-broadcast shifts are built in the wrapper and
    # handed to the kernel as VMEM refs (not held live in vregs).
    row_b = np.arange(B * C)[:, None] // C
    lane_b = np.arange(BN)[None, :] // N
    bmask = (row_b == lane_b).astype(np.float32)                      # [B*C, BN]
    c_head = np.arange(C)[:, None] // d
    e_head = (np.arange(B * C)[None, :] % C) // d
    hmask = np.where(c_head == e_head, 0.125, 0.0).astype(np.float32)  # [C, B*C]

    sqkv = jnp.broadcast_to(shift_qkv.reshape(C3, 1), (C3, BN)).astype(jnp.float32)
    sp = jnp.broadcast_to(shift_p.reshape(C, 1), (C, BN)).astype(jnp.float32)

    kernel = functools.partial(_attention_kernel, B)
    grid_spec = pltpu.PrefetchScalarGridSpec(
        num_scalar_prefetch=0,
        grid=(T,),
        in_specs=[
            pl.BlockSpec((None, C, BN), lambda t: (t, 0, 0)),   # x: per-t DMA
            pl.BlockSpec((C3, C), lambda t: (0, 0)),            # wqkv (bf16)
            pl.BlockSpec((C, C), lambda t: (0, 0)),             # wp   (bf16)
            pl.BlockSpec((C3, BN), lambda t: (0, 0)),           # qkv BN shift
            pl.BlockSpec((C, BN), lambda t: (0, 0)),            # proj BN shift
            pl.BlockSpec((B * C, BN), lambda t: (0, 0)),        # batch mask
            pl.BlockSpec((C, B * C), lambda t: (0, 0)),         # head mask*0.125
        ],
        out_specs=pl.BlockSpec((None, C, BN), lambda t: (t, 0, 0)),
        scratch_shapes=[pltpu.VMEM((C, BN), jnp.float32),       # proj_lif membrane
                        pltpu.VMEM((C3, BN), jnp.float32),      # q/k/v membranes
                        pltpu.VMEM((C, BN), jnp.float32)],      # attn_lif membrane
    )
    out = pl.pallas_call(
        kernel,
        out_shape=jax.ShapeDtypeStruct((T, C, BN), jnp.float32),
        grid_spec=grid_spec,
        compiler_params=pltpu.CompilerParams(
            dimension_semantics=("arbitrary",)),  # T is sequential (stateful LIF)
    )(x, wqkv, wp, sqkv, sp, jnp.asarray(bmask), jnp.asarray(hmask))
    # [T, C, B*N] -> [T, B, C, H, W]
    return (out.reshape(T, C, B, N).transpose(0, 2, 1, 3)
            .reshape(T, B, C, H, W))


def reference(x5d, wqkv, wp, shift_qkv, shift_p, num_heads):
    """Pure-JAX reference mirroring the PyTorch forward step by step
    (separate q/k/v convs and LIF states, explicit per-head attention matrix,
    the module's transpose/reshape/permute head split)."""
    T, B, C, H, W = x5d.shape
    N = H * W
    d = C // num_heads
    wq, wk, wv = wqkv[:C], wqkv[C:2 * C], wqkv[2 * C:]
    sq, sk, sv = shift_qkv[:C], shift_qkv[C:2 * C], shift_qkv[2 * C:]
    x = x5d.reshape(T, B, C, N).astype(jnp.float32)

    def conv_bn(w, s, xs):
        y = jnp.einsum("oc,bcn->bon", w, xs.astype(jnp.bfloat16),
                       preferred_element_type=jnp.float32)
        return y + s[None, :, None]

    zeros = jnp.zeros((B, C, N), jnp.float32)
    m_proj, m_q, m_k, m_v, m_attn = zeros, zeros, zeros, zeros, zeros
    outs = []
    for t in range(T):
        xs, m_proj = _lif(x[t], m_proj, 1.0)
        qs, m_q = _lif(conv_bn(wq, sq, xs), m_q, 1.0)
        ks, m_k = _lif(conv_bn(wk, sk, xs), m_k, 1.0)
        vs, m_v = _lif(conv_bn(wv, sv, xs), m_v, 1.0)
        # torch: transpose(-1,-2).reshape(T,B,N,h,d).permute(0,1,3,2,4)
        q = qs.transpose(0, 2, 1).reshape(B, N, num_heads, d).transpose(0, 2, 1, 3)
        k = ks.transpose(0, 2, 1).reshape(B, N, num_heads, d).transpose(0, 2, 1, 3)
        v = vs.transpose(0, 2, 1).reshape(B, N, num_heads, d).transpose(0, 2, 1, 3)
        attn = jnp.einsum("bhnd,bhmd->bhnm", q, k)
        y = jnp.einsum("bhnm,bhmd->bhnd", attn, v) * 0.125
        y = y.transpose(0, 1, 3, 2).reshape(B, C, N)      # transpose(3,4)+reshape
        ys, m_attn = _lif(y, m_attn, 0.5)
        out = jnp.einsum("oc,bcn->bon", wp, ys.astype(jnp.bfloat16),
                         preferred_element_type=jnp.float32) + shift_p[None, :, None]
        outs.append(out)
    return jnp.stack(outs).reshape(T, B, C, H, W)


if __name__ == "__main__":
    # Small shapes consistent with the module: dim=32, num_heads=8 -> head_dim=4.
    T, B, C, H, W = 2, 2, 32, 8, 8
    num_heads = 8

    key = jax.random.PRNGKey(0)
    keys = jax.random.split(key, 8)
    x = jax.random.normal(keys[0], (T, B, C, H, W), jnp.float32) * 3.0

    # Conv1d (kernel_size=1) weights, squeezed to [C_out, C_in].
    wq = jax.random.normal(keys[1], (C, C), jnp.float32) * 0.2
    wk = jax.random.normal(keys[2], (C, C), jnp.float32) * 0.2
    wv = jax.random.normal(keys[3], (C, C), jnp.float32) * 0.2
    wp = jax.random.normal(keys[4], (C, C), jnp.float32) * 0.2
    bp = jax.random.normal(keys[5], (C,), jnp.float32) * 0.1   # proj_conv bias

    # BatchNorm1d params, inference mode, reduced to (scale, shift).
    def bn_params(kg, kb, km, kvr):
        gamma = 1.0 + 0.2 * jax.random.normal(kg, (C,), jnp.float32)
        beta = 0.1 * jax.random.normal(kb, (C,), jnp.float32)
        mean = 0.1 * jax.random.normal(km, (C,), jnp.float32)
        var = 1.0 + 0.2 * jax.random.uniform(kvr, (C,), jnp.float32)
        scale = gamma / jnp.sqrt(var + 1e-5)
        shift = beta - mean * scale
        return scale, shift

    bnkeys = jax.random.split(keys[6], 16)
    q_bn = bn_params(*bnkeys[0:4])
    k_bn = bn_params(*bnkeys[4:8])
    v_bn = bn_params(*bnkeys[8:12])
    p_bn = bn_params(*bnkeys[12:16])

    wqkv, wp_f, shift_qkv, shift_p = fold_bn_into_conv(
        wq, wk, wv, wp, bp, q_bn, k_bn, v_bn, p_bn)

    out = spiking_self_attention(x, wqkv, wp_f, shift_qkv, shift_p, num_heads)
    out = jax.block_until_ready(out)

    ref = reference(x, wqkv, wp_f, shift_qkv, shift_p, num_heads)
    if not np.allclose(np.asarray(out), np.asarray(ref), rtol=1e-3, atol=1e-3):
        raise AssertionError("Pallas kernel output does not match JAX reference")

    print("KERNEL_OK")
</pallas_src>

<mosaic_0001>
module attributes {stable_mosaic.version = 11 : i64} {
  func.func @_attention_kernel(%arg0: i32, %arg1: memref<1x32x128xf32, #tpu.memory_space<vmem>>, %arg2: memref<96x32xbf16, #tpu.memory_space<vmem>>, %arg3: memref<32x32xbf16, #tpu.memory_space<vmem>>, %arg4: memref<96x128xf32, #tpu.memory_space<vmem>>, %arg5: memref<32x128xf32, #tpu.memory_space<vmem>>, %arg6: memref<64x128xf32, #tpu.memory_space<vmem>>, %arg7: memref<32x64xf32, #tpu.memory_space<vmem>>, %arg8: memref<1x32x128xf32, #tpu.memory_space<vmem>>, %arg9: memref<32x128xf32, #tpu.memory_space<vmem>>, %arg10: memref<96x128xf32, #tpu.memory_space<vmem>>, %arg11: memref<32x128xf32, #tpu.memory_space<vmem>>) attributes {dimension_semantics = [#tpu.dimension_semantics<arbitrary>], iteration_bounds = array<i64: 2>, scalar_prefetch = 0 : i64, scratch_operands = 3 : i64, tpu.core_type = #tpu.core_type<tc>, window_params = [{transform_indices = @transform_0, window_bounds = array<i64: 1, 32, 128>}, {pipeline_mode = #tpu.pipeline_mode<synchronous>, transform_indices = @transform_1, window_bounds = array<i64: 96, 32>}, {pipeline_mode = #tpu.pipeline_mode<synchronous>, transform_indices = @transform_2, window_bounds = array<i64: 32, 32>}, {pipeline_mode = #tpu.pipeline_mode<synchronous>, transform_indices = @transform_3, window_bounds = array<i64: 96, 128>}, {pipeline_mode = #tpu.pipeline_mode<synchronous>, transform_indices = @transform_4, window_bounds = array<i64: 32, 128>}, {pipeline_mode = #tpu.pipeline_mode<synchronous>, transform_indices = @transform_5, window_bounds = array<i64: 64, 128>}, {pipeline_mode = #tpu.pipeline_mode<synchronous>, transform_indices = @transform_6, window_bounds = array<i64: 32, 64>}, {transform_indices = @transform_7, window_bounds = array<i64: 1, 32, 128>}]} {
    %c0_i32 = arith.constant 0 : i32
    %0 = arith.cmpi eq, %arg0, %c0_i32 : i32
    %1 = arith.extui %0 : i1 to i32
    %c0_i32_0 = arith.constant 0 : i32
    %2 = arith.cmpi ne, %1, %c0_i32_0 : i32
    scf.if %2 {
      %cst_42 = arith.constant 0.000000e+00 : f32
      %73 = vector.broadcast %cst_42 : f32 to vector<32x128xf32>
      %c0_43 = arith.constant 0 : index
      %c0_44 = arith.constant 0 : index
      %74 = vector.load %arg9[%c0_43, %c0_44] : memref<32x128xf32, #tpu.memory_space<vmem>>, vector<32x128xf32>
      tpu.vector_store %arg9[%c0_43, %c0_44], %73 {strides = array<i32>} : memref<32x128xf32, #tpu.memory_space<vmem>>, vector<32x128xf32>,
      %cst_45 = arith.constant 0.000000e+00 : f32
      %75 = vector.broadcast %cst_45 : f32 to vector<96x128xf32>
      %c0_46 = arith.constant 0 : index
      %c0_47 = arith.constant 0 : index
      %76 = vector.load %arg10[%c0_46, %c0_47] : memref<96x128xf32, #tpu.memory_space<vmem>>, vector<96x128xf32>
      tpu.vector_store %arg10[%c0_46, %c0_47], %75 {strides = array<i32>} : memref<96x128xf32, #tpu.memory_space<vmem>>, vector<96x128xf32>,
      %cst_48 = arith.constant 0.000000e+00 : f32
      %77 = vector.broadcast %cst_48 : f32 to vector<32x128xf32>
      %c0_49 = arith.constant 0 : index
      %c0_50 = arith.constant 0 : index
      %78 = vector.load %arg11[%c0_49, %c0_50] : memref<32x128xf32, #tpu.memory_space<vmem>>, vector<32x128xf32>
      tpu.vector_store %arg11[%c0_49, %c0_50], %77 {strides = array<i32>} : memref<32x128xf32, #tpu.memory_space<vmem>>, vector<32x128xf32>,
    } else {
    }
    %c0 = arith.constant 0 : index
    %c0_1 = arith.constant 0 : index
    %c0_2 = arith.constant 0 : index
    %3 = vector.load %arg1[%c0, %c0_1, %c0_2] : memref<1x32x128xf32, #tpu.memory_space<vmem>>, vector<1x32x128xf32>
    %4 = vector.shape_cast %3 : vector<1x32x128xf32> to vector<32x128xf32>
    %c0_3 = arith.constant 0 : index
    %c0_4 = arith.constant 0 : index
    %5 = vector.load %arg9[%c0_3, %c0_4] : memref<32x128xf32, #tpu.memory_space<vmem>>, vector<32x128xf32>
    %6 = arith.subf %4, %5 : vector<32x128xf32>
    %cst = arith.constant 0.571428597 : f32
    %7 = vector.broadcast %cst : f32 to vector<32x128xf32>
    %8 = arith.mulf %6, %7 : vector<32x128xf32>
    %9 = arith.addf %5, %8 : vector<32x128xf32>
    %cst_5 = arith.constant 1.000000e+00 : f32
    %10 = vector.broadcast %cst_5 : f32 to vector<32x128xf32>
    %11 = arith.cmpf oge, %9, %10 : vector<32x128xf32>
    %12 = arith.extui %11 : vector<32x128xi1> to vector<32x128xi32>
    %13 = arith.sitofp %12 : vector<32x128xi32> to vector<32x128xf32>
    %cst_6 = arith.constant 1.000000e+00 : f32
    %14 = vector.broadcast %cst_6 : f32 to vector<32x128xf32>
    %15 = arith.subf %14, %13 : vector<32x128xf32>
    %16 = arith.mulf %9, %15 : vector<32x128xf32>
    %c0_7 = arith.constant 0 : index
    %c0_8 = arith.constant 0 : index
    %17 = vector.load %arg9[%c0_7, %c0_8] : memref<32x128xf32, #tpu.memory_space<vmem>>, vector<32x128xf32>
    tpu.vector_store %arg9[%c0_7, %c0_8], %16 {strides = array<i32>} : memref<32x128xf32, #tpu.memory_space<vmem>>, vector<32x128xf32>,
    %c0_9 = arith.constant 0 : index
    %c0_10 = arith.constant 0 : index
    %18 = vector.load %arg2[%c0_9, %c0_10] : memref<96x32xbf16, #tpu.memory_space<vmem>>, vector<96x32xbf16>
    %19 = arith.truncf %13 : vector<32x128xf32> to vector<32x128xbf16>
    %cst_11 = arith.constant dense<0.000000e+00> : vector<96x128xf32>
    %20 = tpu.matmul %18, %19, %cst_11 {dimension_numbers = #tpu.dot_dimension_numbers<[1], [0], [0], [1], [0, 0, 1, 1], [], []>} : vector<96x32xbf16>, vector<32x128xbf16>, vector<96x128xf32> -> vector<96x128xf32>
    %c0_12 = arith.constant 0 : index
    %c0_13 = arith.constant 0 : index
    %21 = vector.load %arg4[%c0_12, %c0_13] : memref<96x128xf32, #tpu.memory_space<vmem>>, vector<96x128xf32>
    %22 = arith.addf %20, %21 : vector<96x128xf32>
    %c0_14 = arith.constant 0 : index
    %c0_15 = arith.constant 0 : index
    %23 = vector.load %arg10[%c0_14, %c0_15] : memref<96x128xf32, #tpu.memory_space<vmem>>, vector<96x128xf32>
    %24 = arith.subf %22, %23 : vector<96x128xf32>
    %cst_16 = arith.constant 0.571428597 : f32
    %25 = vector.broadcast %cst_16 : f32 to vector<96x128xf32>
    %26 = arith.mulf %24, %25 : vector<96x128xf32>
    %27 = arith.addf %23, %26 : vector<96x128xf32>
    %cst_17 = arith.constant 1.000000e+00 : f32
    %28 = vector.broadcast %cst_17 : f32 to vector<96x128xf32>
    %29 = arith.cmpf oge, %27, %28 : vector<96x128xf32>
    %30 = arith.extui %29 : vector<96x128xi1> to vector<96x128xi32>
    %31 = arith.sitofp %30 : vector<96x128xi32> to vector<96x128xf32>
    %cst_18 = arith.constant 1.000000e+00 : f32
    %32 = vector.broadcast %cst_18 : f32 to vector<96x128xf32>
    %33 = arith.subf %32, %31 : vector<96x128xf32>
    %34 = arith.mulf %27, %33 : vector<96x128xf32>
    %c0_19 = arith.constant 0 : index
    %c0_20 = arith.constant 0 : index
    %35 = vector.load %arg10[%c0_19, %c0_20] : memref<96x128xf32, #tpu.memory_space<vmem>>, vector<96x128xf32>
    tpu.vector_store %arg10[%c0_19, %c0_20], %34 {strides = array<i32>} : memref<96x128xf32, #tpu.memory_space<vmem>>, vector<96x128xf32>,
    %36 = vector.extract_strided_slice %31 {offsets = [0, 0], sizes = [32, 128], strides = [1, 1]} : vector<96x128xf32> to vector<32x128xf32>
    %37 = vector.extract_strided_slice %31 {offsets = [32, 0], sizes = [32, 128], strides = [1, 1]} : vector<96x128xf32> to vector<32x128xf32>
    %38 = vector.extract_strided_slice %31 {offsets = [64, 0], sizes = [32, 128], strides = [1, 1]} : vector<96x128xf32> to vector<32x128xf32>
    %c0_21 = arith.constant 0 : index
    %c0_22 = arith.constant 0 : index
    %39 = vector.load %arg6[%c0_21, %c0_22] : memref<64x128xf32, #tpu.memory_space<vmem>>, vector<64x128xf32>
    %40 = tpu.concatenate %37, %37 in 0 : vector<32x128xf32>, vector<32x128xf32> -> vector<64x128xf32>
    %41 = arith.mulf %40, %39 : vector<64x128xf32>
    %42 = arith.truncf %41 : vector<64x128xf32> to vector<64x128xbf16>
    %43 = tpu.concatenate %36, %36 in 0 : vector<32x128xf32>, vector<32x128xf32> -> vector<64x128xf32>
    %44 = arith.mulf %43, %39 : vector<64x128xf32>
    %45 = arith.truncf %44 : vector<64x128xf32> to vector<64x128xbf16>
    %46 = arith.truncf %38 : vector<32x128xf32> to vector<32x128xbf16>
    "tpu.trace_start"() <{level = 10 : i32, message = "cm,em->ce"}> : () -> ()
    %cst_23 = arith.constant dense<0.000000e+00> : vector<32x64xf32>
    %47 = tpu.matmul %46, %42, %cst_23 {dimension_numbers = #tpu.dot_dimension_numbers<[1], [1], [0], [0], [0, 0, 1, 0], [], []>} : vector<32x128xbf16>, vector<64x128xbf16>, vector<32x64xf32> -> vector<32x64xf32>
    "tpu.trace_stop"() : () -> ()
    %c0_24 = arith.constant 0 : index
    %c0_25 = arith.constant 0 : index
    %48 = vector.load %arg7[%c0_24, %c0_25] : memref<32x64xf32, #tpu.memory_space<vmem>>, vector<32x64xf32>
    %49 = arith.mulf %47, %48 : vector<32x64xf32>
    %50 = arith.truncf %49 : vector<32x64xf32> to vector<32x64xbf16>
    "tpu.trace_start"() <{level = 10 : i32, message = "ce,en->cn"}> : () -> ()
    %cst_26 = arith.constant dense<0.000000e+00> : vector<32x128xf32>
    %51 = tpu.matmul %50, %45, %cst_26 {dimension_numbers = #tpu.dot_dimension_numbers<[1], [0], [0], [1], [0, 0, 1, 1], [], []>} : vector<32x64xbf16>, vector<64x128xbf16>, vector<32x128xf32> -> vector<32x128xf32>
    "tpu.trace_stop"() : () -> ()
    %c0_27 = arith.constant 0 : index
    %c0_28 = arith.constant 0 : index
    %52 = vector.load %arg11[%c0_27, %c0_28] : memref<32x128xf32, #tpu.memory_space<vmem>>, vector<32x128xf32>
    %53 = arith.subf %51, %52 : vector<32x128xf32>
    %cst_29 = arith.constant 0.571428597 : f32
    %54 = vector.broadcast %cst_29 : f32 to vector<32x128xf32>
    %55 = arith.mulf %53, %54 : vector<32x128xf32>
    %56 = arith.addf %52, %55 : vector<32x128xf32>
    %cst_30 = arith.constant 5.000000e-01 : f32
    %57 = vector.broadcast %cst_30 : f32 to vector<32x128xf32>
    %58 = arith.cmpf oge, %56, %57 : vector<32x128xf32>
    %59 = arith.extui %58 : vector<32x128xi1> to vector<32x128xi32>
    %60 = arith.sitofp %59 : vector<32x128xi32> to vector<32x128xf32>
    %cst_31 = arith.constant 1.000000e+00 : f32
    %61 = vector.broadcast %cst_31 : f32 to vector<32x128xf32>
    %62 = arith.subf %61, %60 : vector<32x128xf32>
    %63 = arith.mulf %56, %62 : vector<32x128xf32>
    %c0_32 = arith.constant 0 : index
    %c0_33 = arith.constant 0 : index
    %64 = vector.load %arg11[%c0_32, %c0_33] : memref<32x128xf32, #tpu.memory_space<vmem>>, vector<32x128xf32>
    tpu.vector_store %arg11[%c0_32, %c0_33], %63 {strides = array<i32>} : memref<32x128xf32, #tpu.memory_space<vmem>>, vector<32x128xf32>,
    %c0_34 = arith.constant 0 : index
    %c0_35 = arith.constant 0 : index
    %65 = vector.load %arg3[%c0_34, %c0_35] : memref<32x32xbf16, #tpu.memory_space<vmem>>, vector<32x32xbf16>
    %66 = arith.truncf %60 : vector<32x128xf32> to vector<32x128xbf16>
    %cst_36 = arith.constant dense<0.000000e+00> : vector<32x128xf32>
    %67 = tpu.matmul %65, %66, %cst_36 {dimension_numbers = #tpu.dot_dimension_numbers<[1], [0], [0], [1], [0, 0, 1, 1], [], []>} : vector<32x32xbf16>, vector<32x128xbf16>, vector<32x128xf32> -> vector<32x128xf32>
    %c0_37 = arith.constant 0 : index
    %c0_38 = arith.constant 0 : index
    %68 = vector.load %arg5[%c0_37, %c0_38] : memref<32x128xf32, #tpu.memory_space<vmem>>, vector<32x128xf32>
    %69 = arith.addf %67, %68 : vector<32x128xf32>
    %c0_39 = arith.constant 0 : index
    %c0_40 = arith.constant 0 : index
    %c0_41 = arith.constant 0 : index
    %70 = vector.load %arg8[%c0_39, %c0_40, %c0_41] : memref<1x32x128xf32, #tpu.memory_space<vmem>>, vector<1x32x128xf32>
    %71 = vector.shape_cast %70 : vector<1x32x128xf32> to vector<32x128xf32>
    %72 = vector.shape_cast %69 : vector<32x128xf32> to vector<1x32x128xf32>
    tpu.vector_store %arg8[%c0_39, %c0_40, %c0_41], %72 {strides = array<i32>} : memref<1x32x128xf32, #tpu.memory_space<vmem>>, vector<1x32x128xf32>,
    return
  }
  func.func @transform_0(%arg0: i32) -> (i32, i32, i32) {
    %c0_i32 = arith.constant 0 : i32
    %c0_i32_0 = arith.constant 0 : i32
    %c0_i32_1 = arith.constant 0 : i32
    return %arg0, %c0_i32, %c0_i32_0 : i32, i32, i32
  }
  func.func @transform_1(%arg0: i32) -> (i32, i32) {
    %c0_i32 = arith.constant 0 : i32
    %c0_i32_0 = arith.constant 0 : i32
    %c0_i32_1 = arith.constant 0 : i32
    return %c0_i32, %c0_i32_0 : i32, i32
  }
  func.func @transform_2(%arg0: i32) -> (i32, i32) {
    %c0_i32 = arith.constant 0 : i32
    %c0_i32_0 = arith.constant 0 : i32
    %c0_i32_1 = arith.constant 0 : i32
    return %c0_i32, %c0_i32_0 : i32, i32
  }
  func.func @transform_3(%arg0: i32) -> (i32, i32) {
    %c0_i32 = arith.constant 0 : i32
    %c0_i32_0 = arith.constant 0 : i32
    %c0_i32_1 = arith.constant 0 : i32
    return %c0_i32, %c0_i32_0 : i32, i32
  }
  func.func @transform_4(%arg0: i32) -> (i32, i32) {
    %c0_i32 = arith.constant 0 : i32
    %c0_i32_0 = arith.constant 0 : i32
    %c0_i32_1 = arith.constant 0 : i32
    return %c0_i32, %c0_i32_0 : i32, i32
  }
  func.func @transform_5(%arg0: i32) -> (i32, i32) {
    %c0_i32 = arith.constant 0 : i32
    %c0_i32_0 = arith.constant 0 : i32
    %c0_i32_1 = arith.constant 0 : i32
    return %c0_i32, %c0_i32_0 : i32, i32
  }
  func.func @transform_6(%arg0: i32) -> (i32, i32) {
    %c0_i32 = arith.constant 0 : i32
    %c0_i32_0 = arith.constant 0 : i32
    %c0_i32_1 = arith.constant 0 : i32
    return %c0_i32, %c0_i32_0 : i32, i32
  }
  func.func @transform_7(%arg0: i32) -> (i32, i32, i32) {
    %c0_i32 = arith.constant 0 : i32
    %c0_i32_0 = arith.constant 0 : i32
    %c0_i32_1 = arith.constant 0 : i32
    return %arg0, %c0_i32, %c0_i32_0 : i32, i32, i32
  }
}

</mosaic_0001>

<llo_original>
// kernel: tpu_custom_call.1
$region0: #{tpu_custom_call.1}
  #allocation0 [shape = 'u32[]', space=smem, size = 0x4, offset = 0x4, fixed_abs, tag = 'smem constant byte address 0x4 - core index']
  #allocation1 [shape = 'u32[144,128]{1,0:T(1,128)}', space=vmem, size = 0x12000, scoped, tag = 'internal scratch']
  #allocation2 [shape = 'f32[32,128]{1,0:T(8,128)}', space=vmem, size = 0x4000, scoped, tag = 'scratch operand']
  #allocation3 [shape = 'f32[96,128]{1,0:T(8,128)}', space=vmem, size = 0xc000, scoped, tag = 'scratch operand']
  #allocation4 [shape = 'f32[32,128]{1,0:T(8,128)}', space=vmem, size = 0x4000, scoped, tag = 'scratch operand']
  %s0 = inlined_call_operand.vmem [shape: f32[2,32,128], index: 0, kind: input, shape index: {}]
  %s1 = inlined_call_operand.vmem [shape: bf16[96,32], index: 1, kind: input, shape index: {}]
  %s2 = inlined_call_operand.hbm [shape: bf16[32,32], index: 2, kind: input, shape index: {}]
  %s3 = inlined_call_operand.hbm [shape: f32[96,128], index: 3, kind: input, shape index: {}]
  %s4 = inlined_call_operand.hbm [shape: f32[32,128], index: 4, kind: input, shape index: {}]
  %s5 = inlined_call_operand.hbm [shape: f32[64,128], index: 5, kind: input, shape index: {}]
  %s6 = inlined_call_operand.hbm [shape: f32[32,64], index: 6, kind: input, shape index: {}]
  %s7 = inlined_call_operand.hbm [shape: f32[2,32,128], index: 7, kind: output, shape index: {}]
  %s8 = sld [smem:[#allocation0]]
  $region85: #{tpu_custom_call.1} parent=0
    _
  %s10 = ssub.s32 1, %s8
  %s11 = scalar_select 0, %s10, %s8
  $region1: #{tpu_custom_call.1} parent=0
    #allocation5 [shape = 'u8[8192]{0}', space=vmem, size = 0x2000, scoped, tag = 'input window, operand 2, single buffered']
    #allocation6 [shape = 's32[2]{0}', space=sflag, size = 0x8, scoped, tag = 'scoped memory for tpu_custom_call.1']
    #allocation7 [shape = 's32[2]{0}', space=sflag, size = 0x8, scoped, tag = 'scoped memory for tpu_custom_call.1']
    #allocation8 [shape = 'u8[49152]{0}', space=vmem, size = 0xc000, scoped, tag = 'input window, operand 3, single buffered']
    #allocation9 [shape = 's32[1]{0}', space=sflag, size = 0x4, scoped, tag = 'scoped memory for tpu_custom_call.1']
    #allocation10 [shape = 'u8[16384]{0}', space=vmem, size = 0x4000, scoped, tag = 'input window, operand 4, single buffered']
    #allocation11 [shape = 'u8[32768]{0}', space=vmem, size = 0x8000, scoped, tag = 'input window, operand 5, single buffered']
    #allocation12 [shape = 's32[1]{0}', space=sflag, size = 0x4, scoped, tag = 'scoped memory for tpu_custom_call.1']
    #allocation13 [shape = 'u8[16384]{0}', space=vmem, size = 0x4000, scoped, tag = 'input window, operand 6, single buffered']
    #allocation14 [shape = 'u8[32768]{0}', space=vmem, size = 0x8000, scoped, tag = 'output window, operand 0']
    %12 = vsyncpa [#allocation6], 0
    %13 = vsyncpa [#allocation9], 0
    %14 = vsyncpa [#allocation12], 0
    %15 = vsyncpa [#allocation7], 0
    %s16 = scalar_lea.sflag [#allocation7], 1
    %17 = vsyncpa %s16, 0
    loop: start=0, step=1, limit=4
    $region2: #{tpu_custom_call.1} parent=1 // loop_pre_header
      _
    $region3: #{tpu_custom_call.1} parent=1 // loop_header
      %s19 = sphi 0, %s23
      %p20 = scmp.ge.s32.totalorder %s19, 4
      %s29 = sphi 0, %s31
      %s32 = sphi 0, %s29
      %s33 = sphi 0, %s32
      %s49 = sphi 0, %s33
      %s53 = sphi 0, %s53
      %s55 = sphi 0, %s53
      %s56 = sphi 0, %s55
      %s70 = sphi 0, %s56
      %s74 = sphi 0, %s74
      %s76 = sphi 0, %s74
      %s77 = sphi 0, %s76
      %s91 = sphi 0, %s77
      %s95 = sphi 0, %s95
      %s97 = sphi 0, %s95
      %s98 = sphi 0, %s97
      %s112 = sphi 0, %s98
      %s116 = sphi 0, %s116
      %s118 = sphi 0, %s116
      %s119 = sphi 0, %s118
      %s133 = sphi 0, %s119
      %s137 = sphi 0, %s137
      %s139 = sphi 0, %s137
      %s140 = sphi 0, %s139
      %s154 = sphi 0, %s140
      %s158 = sphi 0, %s158
      %s160 = sphi 0, %s158
      %s161 = sphi 0, %s160
      %s175 = sphi 0, %s161
      %s181 = sphi 0, %s183
      %s184 = sphi 0, %s181
      %s185 = sphi 0, %s184
      %s201 = sphi 0, %s185
    $region4: #{tpu_custom_call.1} parent=1 // loop_header_branch
      %22 = sbr.rel (%p20) target = $region8
    $region5: #{tpu_custom_call.1} parent=1 // loop_body
      %s24 = ssub.s32 %s19, 1
      %s25 = ssub.s32 %s19, 2
      %s26 = sadd.s32 %s19, 1
      %s27 = ssub.s32 %s19, %s26
      %p28 = scmp.eq.s32.totalorder %s27, 0
      %s30 = sadd.s32 %s29, 1
      %s31 = scalar_select %p28, %s29, %s30
      %p34 = pneg %p28
      %p35 = scmp.eq.s32.totalorder %s19, 1
      %p36 = por %p34, %p35
      %p37 = scmp.ne.s32.totalorder %s29, %s32
      %p38 = scmp.eq.s32.totalorder %s19, 0
      %p39 = por %p37, %p38
      %p40 = scmp.ne.s32.totalorder %s29, %s32
      %p41 = scmp.eq.s32.totalorder %s24, 1
      %p42 = por %p40, %p41
      %p43 = scmp.ne.s32.totalorder %s32, %s33
      %p44 = scmp.eq.s32.totalorder %s24, 0
      %p45 = por %p43, %p44
      %p46 = scmp.ne.s32.totalorder %s32, %s33
      %p47 = scmp.eq.s32.totalorder %s25, 1
      %p48 = por %p46, %p47
      %p50 = scmp.ne.s32.totalorder %s33, %s49
      %p51 = scmp.eq.s32.totalorder %s25, 0
      %p52 = por %p50, %p51
      %s54 = sadd.s32 %s53, 1
      %p57 = scmp.eq.s32.totalorder %s19, 1
      %p58 = scmp.ne.s32.totalorder %s53, %s55
      %p59 = scmp.eq.s32.totalorder %s19, 0
      %p60 = por %p58, %p59
      %p61 = scmp.ne.s32.totalorder %s53, %s55
      %p62 = scmp.eq.s32.totalorder %s24, 1
      %p63 = por %p61, %p62
      %p64 = scmp.ne.s32.totalorder %s55, %s56
      %p65 = scmp.eq.s32.totalorder %s24, 0
      %p66 = por %p64, %p65
      %p67 = scmp.ne.s32.totalorder %s55, %s56
      %p68 = scmp.eq.s32.totalorder %s25, 1
      %p69 = por %p67, %p68
      %p71 = scmp.ne.s32.totalorder %s56, %s70
      %p72 = scmp.eq.s32.totalorder %s25, 0
      %p73 = por %p71, %p72
      %s75 = sadd.s32 %s74, 1
      %p78 = scmp.eq.s32.totalorder %s19, 1
      %p79 = scmp.ne.s32.totalorder %s74, %s76
      %p80 = scmp.eq.s32.totalorder %s19, 0
      %p81 = por %p79, %p80
      %p82 = scmp.ne.s32.totalorder %s74, %s76
      %p83 = scmp.eq.s32.totalorder %s24, 1
      %p84 = por %p82, %p83
      %p85 = scmp.ne.s32.totalorder %s76, %s77
      %p86 = scmp.eq.s32.totalorder %s24, 0
      %p87 = por %p85, %p86
      %p88 = scmp.ne.s32.totalorder %s76, %s77
      %p89 = scmp.eq.s32.totalorder %s25, 1
      %p90 = por %p88, %p89
      %p92 = scmp.ne.s32.totalorder %s77, %s91
      %p93 = scmp.eq.s32.totalorder %s25, 0
      %p94 = por %p92, %p93
      %s96 = sadd.s32 %s95, 1
      %p99 = scmp.eq.s32.totalorder %s19, 1
      %p100 = scmp.ne.s32.totalorder %s95, %s97
      %p101 = scmp.eq.s32.totalorder %s19, 0
      %p102 = por %p100, %p101
      %p103 = scmp.ne.s32.totalorder %s95, %s97
      %p104 = scmp.eq.s32.totalorder %s24, 1
      %p105 = por %p103, %p104
      %p106 = scmp.ne.s32.totalorder %s97, %s98
      %p107 = scmp.eq.s32.totalorder %s24, 0
      %p108 = por %p106, %p107
      %p109 = scmp.ne.s32.totalorder %s97, %s98
      %p110 = scmp.eq.s32.totalorder %s25, 1
      %p111 = por %p109, %p110
      %p113 = scmp.ne.s32.totalorder %s98, %s112
      %p114 = scmp.eq.s32.totalorder %s25, 0
      %p115 = por %p113, %p114
      %s117 = sadd.s32 %s116, 1
      %p120 = scmp.eq.s32.totalorder %s19, 1
      %p121 = scmp.ne.s32.totalorder %s116, %s118
      %p122 = scmp.eq.s32.totalorder %s19, 0
      %p123 = por %p121, %p122
      %p124 = scmp.ne.s32.totalorder %s116, %s118
      %p125 = scmp.eq.s32.totalorder %s24, 1
      %p126 = por %p124, %p125
      %p127 = scmp.ne.s32.totalorder %s118, %s119
      %p128 = scmp.eq.s32.totalorder %s24, 0
      %p129 = por %p127, %p128
      %p130 = scmp.ne.s32.totalorder %s118, %s119
      %p131 = scmp.eq.s32.totalorder %s25, 1
      %p132 = por %p130, %p131
      %p134 = scmp.ne.s32.totalorder %s119, %s133
      %p135 = scmp.eq.s32.totalorder %s25, 0
      %p136 = por %p134, %p135
      %s138 = sadd.s32 %s137, 1
      %p141 = scmp.eq.s32.totalorder %s19, 1
      %p142 = scmp.ne.s32.totalorder %s137, %s139
      %p143 = scmp.eq.s32.totalorder %s19, 0
      %p144 = por %p142, %p143
      %p145 = scmp.ne.s32.totalorder %s137, %s139
      %p146 = scmp.eq.s32.totalorder %s24, 1
      %p147 = por %p145, %p146
      %p148 = scmp.ne.s32.totalorder %s139, %s140
      %p149 = scmp.eq.s32.totalorder %s24, 0
      %p150 = por %p148, %p149
      %p151 = scmp.ne.s32.totalorder %s139, %s140
      %p152 = scmp.eq.s32.totalorder %s25, 1
      %p153 = por %p151, %p152
      %p155 = scmp.ne.s32.totalorder %s140, %s154
      %p156 = scmp.eq.s32.totalorder %s25, 0
      %p157 = por %p155, %p156
      %s159 = sadd.s32 %s158, 1
      %p162 = scmp.eq.s32.totalorder %s19, 1
      %p163 = scmp.ne.s32.totalorder %s158, %s160
      %p164 = scmp.eq.s32.totalorder %s19, 0
      %p165 = por %p163, %p164
      %p166 = scmp.ne.s32.totalorder %s158, %s160
      %p167 = scmp.eq.s32.totalorder %s24, 1
      %p168 = por %p166, %p167
      %p169 = scmp.ne.s32.totalorder %s160, %s161
      %p170 = scmp.eq.s32.totalorder %s24, 0
      %p171 = por %p169, %p170
      %p172 = scmp.ne.s32.totalorder %s160, %s161
      %p173 = scmp.eq.s32.totalorder %s25, 1
      %p174 = por %p172, %p173
      %p176 = scmp.ne.s32.totalorder %s161, %s175
      %p177 = scmp.eq.s32.totalorder %s25, 0
      %p178 = por %p176, %p177
      %s179 = ssub.s32 %s19, %s26
      %p180 = scmp.eq.s32.totalorder %s179, 0
      %s182 = sadd.s32 %s181, 1
      %s183 = scalar_select %p180, %s181, %s182
      %p186 = pneg %p180
      %p187 = scmp.eq.s32.totalorder %s19, 1
      %p188 = por %p186, %p187
      %p189 = scmp.ne.s32.totalorder %s181, %s184
      %p190 = scmp.eq.s32.totalorder %s19, 0
      %p191 = por %p189, %p190
      %p192 = scmp.ne.s32.totalorder %s181, %s184
      %p193 = scmp.eq.s32.totalorder %s24, 1
      %p194 = por %p192, %p193
      %p195 = scmp.ne.s32.totalorder %s184, %s185
      %p196 = scmp.eq.s32.totalorder %s24, 0
      %p197 = por %p195, %p196
      %p198 = scmp.ne.s32.totalorder %s184, %s185
      %p199 = scmp.eq.s32.totalorder %s25, 1
      %p200 = por %p198, %p199
      %p202 = scmp.ne.s32.totalorder %s185, %s201
      %p203 = scmp.eq.s32.totalorder %s25, 0
      %p204 = por %p202, %p203
      %p205 = scmp.le.s32.totalorder 1, %s19
      %p206 = scmp.lt.s32.totalorder %s19, 3
      %p207 = pnand %p205, %p206
      %p208 = pneg %p207
      // Predicated region
      $region9: #{tpu_custom_call.1} parent=5 // pred_check
        _
      $region10: #{tpu_custom_call.1} parent=5 // pred_check_branch
        %210 = sbr.rel (%p207) target = $region12
      $region11: #{tpu_custom_call.1} parent=5 // pred_region
        %s211 = ssub.s32 %s19, 1
        // Predicated region
        $region13: #{tpu_custom_call.1} parent=11 // pred_check
          %p212 = pneg %p66
        $region14: #{tpu_custom_call.1} parent=11 // pred_check_branch
          %214 = sbr.rel (%p212) target = $region16
        $region15: #{tpu_custom_call.1} parent=11 // pred_region
          _
        $region16: #{tpu_custom_call.1} parent=11 // pred_fallthru
          _
        // Predicated region
        $region17: #{tpu_custom_call.1} parent=11 // pred_check
          %p215 = pneg %p87
        $region18: #{tpu_custom_call.1} parent=11 // pred_check_branch
          %217 = sbr.rel (%p215) target = $region20
        $region19: #{tpu_custom_call.1} parent=11 // pred_region
          %s219 = ssub.s32 256, 256
          %220 = vsyncadd [#allocation6], %s219
          %s221 = sshll.u32 [#allocation5], 4
          %s222 = int_to_ptr.vmem [resolvable:$true] %s221
          %227 = dma.hbm_to_vmem [thread:$0]  %s2, 256, %s222, [#allocation6], 64, 64, 4
        $region20: #{tpu_custom_call.1} parent=11 // pred_fallthru
          _
        // Predicated region
        $region21: #{tpu_custom_call.1} parent=11 // pred_check
          %p228 = pneg %p108
        $region22: #{tpu_custom_call.1} parent=11 // pred_check_branch
          %230 = sbr.rel (%p228) target = $region24
        $region23: #{tpu_custom_call.1} parent=11 // pred_region
          %s232 = ssub.s32 1536, 1536
          %233 = vsyncadd [#allocation9], %s232
          %s234 = sshll.u32 [#allocation8], 4
          %s235 = int_to_ptr.vmem [resolvable:$true] %s234
          %240 = dma.hbm_to_vmem [thread:$0]  %s3, 1536, %s235, [#allocation9], 128, 128, 8
        $region24: #{tpu_custom_call.1} parent=11 // pred_fallthru
          _
        // Predicated region
        $region25: #{tpu_custom_call.1} parent=11 // pred_check
          %p241 = pneg %p129
        $region26: #{tpu_custom_call.1} parent=11 // pred_check_branch
          %243 = sbr.rel (%p241) target = $region28
        $region27: #{tpu_custom_call.1} parent=11 // pred_region
          %s245 = ssub.s32 512, 512
          %246 = vsyncadd [#allocation9], %s245
          %s247 = sshll.u32 [#allocation10], 4
          %s248 = int_to_ptr.vmem [resolvable:$true] %s247
          %253 = dma.hbm_to_vmem [thread:$0]  %s4, 512, %s248, [#allocation9], 128, 128, 8
        $region28: #{tpu_custom_call.1} parent=11 // pred_fallthru
          _
        // Predicated region
        $region29: #{tpu_custom_call.1} parent=11 // pred_check
          %p254 = pneg %p150
        $region30: #{tpu_custom_call.1} parent=11 // pred_check_branch
          %256 = sbr.rel (%p254) target = $region32
        $region31: #{tpu_custom_call.1} parent=11 // pred_region
          %s258 = ssub.s32 1024, 1024
          %259 = vsyncadd [#allocation12], %s258
          %s260 = sshll.u32 [#allocation11], 4
          %s261 = int_to_ptr.vmem [resolvable:$true] %s260
          %266 = dma.hbm_to_vmem [thread:$0]  %s5, 1024, %s261, [#allocation12], 128, 128, 8
        $region32: #{tpu_custom_call.1} parent=11 // pred_fallthru
          _
        // Predicated region
        $region33: #{tpu_custom_call.1} parent=11 // pred_check
          %p267 = pneg %p171
        $region34: #{tpu_custom_call.1} parent=11 // pred_check_branch
          %269 = sbr.rel (%p267) target = $region36
        $region35: #{tpu_custom_call.1} parent=11 // pred_region
          %s271 = ssub.s32 512, 512
          %272 = vsyncadd [#allocation12], %s271
          %s273 = sshll.u32 [#allocation13], 4
          %s274 = int_to_ptr.vmem [resolvable:$true] %s273
          %279 = dma.hbm_to_vmem [thread:$0]  %s6, 512, %s274, [#allocation12], 128, 128, 8
        $region36: #{tpu_custom_call.1} parent=11 // pred_fallthru
          _
      $region12: #{tpu_custom_call.1} parent=5 // pred_fallthru
        _
      %p280 = scmp.lt.s32.totalorder %s19, 2
      // Predicated region
      $region37: #{tpu_custom_call.1} parent=5 // pred_check
        %p281 = pneg %p280
      $region38: #{tpu_custom_call.1} parent=5 // pred_check_branch
        %283 = sbr.rel (%p281) target = $region40
      $region39: #{tpu_custom_call.1} parent=5 // pred_region
        // Predicated region
        $region41: #{tpu_custom_call.1} parent=39 // pred_check
          %p284 = pneg %p39
        $region42: #{tpu_custom_call.1} parent=39 // pred_check_branch
          %286 = sbr.rel (%p284) target = $region44
        $region43: #{tpu_custom_call.1} parent=39 // pred_region
          %p287 = scmp.lt.s32.totalorder %s19, 1
          %s288 = scalar_select %p287, %s19, 1
          %s289 = smul.addr %s288, 4
          %s290 = smul.addr %s289, 8
          %s291 = scalar_lea.vmem %s0, %s290
        $region44: #{tpu_custom_call.1} parent=39 // pred_fallthru
          _
      $region40: #{tpu_custom_call.1} parent=5 // pred_fallthru
        _
      %p292 = scmp.le.s32.totalorder 1, %s19
      %p293 = scmp.lt.s32.totalorder %s19, 3
      %p294 = pnand %p292, %p293
      %p295 = pneg %p294
      // Predicated region
      $region45: #{tpu_custom_call.1} parent=5 // pred_check
        _
      $region46: #{tpu_custom_call.1} parent=5 // pred_check_branch
        %297 = sbr.rel (%p294) target = $region48
      $region47: #{tpu_custom_call.1} parent=5 // pred_region
        %s298 = ssub.s32 %s19, 1
        // Predicated region
        $region49: #{tpu_custom_call.1} parent=47 // pred_check
          %p299 = pneg %p87
        $region50: #{tpu_custom_call.1} parent=47 // pred_check_branch
          %301 = sbr.rel (%p299) target = $region52
        $region51: #{tpu_custom_call.1} parent=47 // pred_region
          %302 = dma.done [#allocation6], 256
        $region52: #{tpu_custom_call.1} parent=47 // pred_fallthru
          _
        // Predicated region
        $region53: #{tpu_custom_call.1} parent=47 // pred_check
          %p303 = pneg %p108
        $region54: #{tpu_custom_call.1} parent=47 // pred_check_branch
          %305 = sbr.rel (%p303) target = $region56
        $region55: #{tpu_custom_call.1} parent=47 // pred_region
          %306 = dma.done [#allocation9], 1536
        $region56: #{tpu_custom_call.1} parent=47 // pred_fallthru
          _
        // Predicated region
        $region57: #{tpu_custom_call.1} parent=47 // pred_check
          %p307 = pneg %p129
        $region58: #{tpu_custom_call.1} parent=47 // pred_check_branch
          %309 = sbr.rel (%p307) target = $region60
        $region59: #{tpu_custom_call.1} parent=47 // pred_region
          %310 = dma.done [#allocation9], 512
        $region60: #{tpu_custom_call.1} parent=47 // pred_fallthru
          _
        // Predicated region
        $region61: #{tpu_custom_call.1} parent=47 // pred_check
          %p311 = pneg %p150
        $region62: #{tpu_custom_call.1} parent=47 // pred_check_branch
          %313 = sbr.rel (%p311) target = $region64
        $region63: #{tpu_custom_call.1} parent=47 // pred_region
          %314 = dma.done [#allocation12], 1024
        $region64: #{tpu_custom_call.1} parent=47 // pred_fallthru
          _
        // Predicated region
        $region65: #{tpu_custom_call.1} parent=47 // pred_check
          %p315 = pneg %p171
        $region66: #{tpu_custom_call.1} parent=47 // pred_check_branch
          %317 = sbr.rel (%p315) target = $region68
        $region67: #{tpu_custom_call.1} parent=47 // pred_region
          %318 = dma.done [#allocation12], 512
        $region68: #{tpu_custom_call.1} parent=47 // pred_fallthru
          _
        %p319 = scmp.lt.s32.totalorder %s24, 1
        %s320 = scalar_select %p319, %s24, 1
        %s321 = smul.addr %s320, 4
        %s322 = smul.addr %s321, 8
        %s323 = scalar_lea.vmem %s0, %s322
        %p324 = pneg %p45
        %p325 = pneg %p42
        %p326 = pneg %p66
        %p327 = pneg %p63
        %p328 = pneg %p87
        %p329 = pneg %p84
        %p330 = pneg %p108
        %p331 = pneg %p105
        %p332 = pneg %p129
        %p333 = pneg %p126
        %p334 = pneg %p150
        %p335 = pneg %p147
        %p336 = pneg %p171
        %p337 = pneg %p168
        %p338 = pneg %p197
        %p339 = pneg %p194
        %s340 = sand.u32 %s184, 1
        %s341 = scalar_lea.sflag [#allocation7], %s340
        %s342 = sand.u32 %s184, 1
        %s343 = smul.addr %s342, 32
        %s344 = scalar_lea.vmem [#allocation14], %s343
        %p345 = scmp.lt.s32.totalorder %s24, 1
        %s346 = scalar_select %p345, %s24, 1
        %s347 = smul.addr %s346, 4
        %s348 = smul.addr %s347, 8
        %s349 = scalar_lea.vmem %s0, %s348
        %p351 = scmp.eq.s32.totalorder %s24, 0
        // Predicated region
        $region69: #{tpu_custom_call.1} parent=47 // pred_check
          %p352 = pneg %p351
        $region70: #{tpu_custom_call.1} parent=47 // pred_check_branch
          %354 = sbr.rel (%p352) target = $region72
        $region71: #{tpu_custom_call.1} parent=47 // pred_region
          %355 = vst [vmem:[#allocation2] sm:$0xff] 0.0
          %356 = vst [vmem:[#allocation2 + $0x8] sm:$0xff] 0.0
          %357 = vst [vmem:[#allocation2 + $0x10] sm:$0xff] 0.0
          %358 = vst [vmem:[#allocation2 + $0x18] sm:$0xff] 0.0
          %359 = vst [vmem:[#allocation3] sm:$0xff] 0.0
          %360 = vst [vmem:[#allocation3 + $0x8] sm:$0xff] 0.0
          %361 = vst [vmem:[#allocation3 + $0x10] sm:$0xff] 0.0
          %362 = vst [vmem:[#allocation3 + $0x18] sm:$0xff] 0.0
          %363 = vst [vmem:[#allocation3 + $0x20] sm:$0xff] 0.0
          %364 = vst [vmem:[#allocation3 + $0x28] sm:$0xff] 0.0
          %365 = vst [vmem:[#allocation3 + $0x30] sm:$0xff] 0.0
          %366 = vst [vmem:[#allocation3 + $0x38] sm:$0xff] 0.0
          %367 = vst [vmem:[#allocation3 + $0x40] sm:$0xff] 0.0
          %368 = vst [vmem:[#allocation3 + $0x48] sm:$0xff] 0.0
          %369 = vst [vmem:[#allocation3 + $0x50] sm:$0xff] 0.0
          %370 = vst [vmem:[#allocation3 + $0x58] sm:$0xff] 0.0
          %371 = vst [vmem:[#allocation4] sm:$0xff] 0.0
          %372 = vst [vmem:[#allocation4 + $0x8] sm:$0xff] 0.0
          %373 = vst [vmem:[#allocation4 + $0x10] sm:$0xff] 0.0
          %374 = vst [vmem:[#allocation4 + $0x18] sm:$0xff] 0.0
        $region72: #{tpu_custom_call.1} parent=47 // pred_fallthru
          _
        %v375 = vld [vmem:[%s349] sm:$0xff]
        %v376 = vld [vmem:[%s349 + $0x8] sm:$0xff]
        %v377 = vld [vmem:[%s349 + $0x10] sm:$0xff]
        %v378 = vld [vmem:[%s349 + $0x18] sm:$0xff]
        %v379 = vld [vmem:[#allocation2] sm:$0xff]
        %v380 = vld [vmem:[#allocation2 + $0x8] sm:$0xff]
        %v381 = vld [vmem:[#allocation2 + $0x10] sm:$0xff]
        %v382 = vld [vmem:[#allocation2 + $0x18] sm:$0xff]
        %v383 = vsub.f32 %v375, %v379
        %v384 = vsub.f32 %v376, %v380
        %v385 = vsub.f32 %v377, %v381
        %v386 = vsub.f32 %v378, %v382
        %v387 = vmul.f32 %v383, 0.5714286
        %v388 = vmul.f32 %v384, 0.5714286
        %v389 = vmul.f32 %v385, 0.5714286
        %v390 = vmul.f32 %v386, 0.5714286
        %v391 = vadd.f32 %v379, %v387
        %v392 = vadd.f32 %v380, %v388
        %v393 = vadd.f32 %v381, %v389
        %v394 = vadd.f32 %v382, %v390
        %vm395 = vcmp.ge.f32.partialorder %v391, 1.0
        %vm396 = vcmp.ge.f32.partialorder %v392, 1.0
        %vm397 = vcmp.ge.f32.partialorder %v393, 1.0
        %vm398 = vcmp.ge.f32.partialorder %v394, 1.0
        %v399 = vsel %vm395, 1, 0
        %v400 = vsel %vm396, 1, 0
        %v401 = vsel %vm397, 1, 0
        %v402 = vsel %vm398, 1, 0
        %v403 = vcvt.s32.f32 %v399
        %v404 = vcvt.s32.f32 %v400
        %v405 = vcvt.s32.f32 %v401
        %v406 = vcvt.s32.f32 %v402
        %v407 = vsub.f32 1.0, %v403
        %v408 = vsub.f32 1.0, %v404
        %v409 = vsub.f32 1.0, %v405
        %v410 = vsub.f32 1.0, %v406
        %v411 = vmul.f32 %v391, %v407
        %v412 = vmul.f32 %v392, %v408
        %v413 = vmul.f32 %v393, %v409
        %v414 = vmul.f32 %v394, %v410
        %415 = vst [vmem:[#allocation2] sm:$0xff] %v411
        %416 = vst [vmem:[#allocation2 + $0x8] sm:$0xff] %v412
        %417 = vst [vmem:[#allocation2 + $0x10] sm:$0xff] %v413
        %418 = vst [vmem:[#allocation2 + $0x18] sm:$0xff] %v414
        %v419 = vld [vmem:[%s1] sm:$0xf]
        %v420 = vld [vmem:[%s1 + $0x4] sm:$0xf]
        %v421 = vld [vmem:[%s1 + $0x8] sm:$0xf]
        %v422 = vld [vmem:[%s1 + $0xc] sm:$0xf]
        %v423 = vld [vmem:[%s1 + $0x10] sm:$0xf]
        %v424 = vld [vmem:[%s1 + $0x14] sm:$0xf]
        %v425 = vld [vmem:[%s1 + $0x18] sm:$0xf]
        %v426 = vld [vmem:[%s1 + $0x1c] sm:$0xf]
        %v427 = vld [vmem:[%s1 + $0x20] sm:$0xf]
        %v428 = vld [vmem:[%s1 + $0x24] sm:$0xf]
        %v429 = vld [vmem:[%s1 + $0x28] sm:$0xf]
        %v430 = vld [vmem:[%s1 + $0x2c] sm:$0xf]
        %v431 = vpack.c.bf16 %v404, %v403
        %v432 = vpack.c.bf16 %v406, %v405
        %v433 = vld [vmem:[#allocation8] sm:$0xff]
        %v434 = vld [vmem:[#allocation8 + $0x8] sm:$0xff]
        %v435 = vld [vmem:[#allocation8 + $0x10] sm:$0xff]
        %v436 = vld [vmem:[#allocation8 + $0x18] sm:$0xff]
        %v437 = vld [vmem:[#allocation8 + $0x20] sm:$0xff]
        %v438 = vld [vmem:[#allocation8 + $0x28] sm:$0xff]
        %v439 = vld [vmem:[#allocation8 + $0x30] sm:$0xff]
        %v440 = vld [vmem:[#allocation8 + $0x38] sm:$0xff]
        %v441 = vld [vmem:[#allocation8 + $0x40] sm:$0xff]
        %v442 = vld [vmem:[#allocation8 + $0x48] sm:$0xff]
        %v443 = vld [vmem:[#allocation8 + $0x50] sm:$0xff]
        %v444 = vld [vmem:[#allocation8 + $0x58] sm:$0xff]
        %v457 = vunpack.c.l.b16 %v419
        %v458 = vunpack.c.l.b16 %v420
        %v459 = vunpack.c.l.b16 %v421
        %v460 = vunpack.c.l.b16 %v422
        %v461 = vunpack.c.l.b16 %v423
        %v462 = vunpack.c.l.b16 %v424
        %v463 = vunpack.c.l.b16 %v425
        %v464 = vunpack.c.l.b16 %v426
        %v465 = vunpack.c.l.b16 %v427
        %v466 = vunpack.c.l.b16 %v428
        %v467 = vunpack.c.l.b16 %v429
        %v468 = vunpack.c.l.b16 %v430
        %v469 = vpack.c.b16 %v458, %v457
        %v470 = vpack.c.b16 %v460, %v459
        %v471 = vpack.c.b16 %v462, %v461
        %v472 = vpack.c.b16 %v464, %v463
        %v473 = vpack.c.b16 %v466, %v465
        %v474 = vpack.c.b16 %v468, %v467
        %vm475 = vcmask 261120
        %v477 = vsel %vm475, %v469, 0
        %v480 = vsel %vm475, %v470, 0
        %v483 = vsel %vm475, %v471, 0
        %v486 = vsel %vm475, %v472, 0
        %v489 = vsel %vm475, %v473, 0
        %v492 = vsel %vm475, %v474, 0
        %494 = vmatprep.subr.bf16.mxu0 0
        %495 = vmatpush1.bf16.msra.mxu0 %v431
        %496 = vmatprep.subr.bf16.mxu0 0
        %497 = vmatpush1.bf16.msra.mxu0 %v432
        %498 = vmatprep.subr.bf16.mxu0 0
        %499 = vmatpush1.bf16.msra.mxu0 0
        %500 = vmatprep.subr.bf16.mxu0 0
        %501 = vmatpush1.bf16.msra.mxu0 0
        %502 = vmatprep.subr.bf16.mxu0 0
        %503 = vmatpush1.bf16.msra.mxu0 0
        %504 = vmatprep.subr.bf16.mxu0 0
        %505 = vmatpush1.bf16.msra.mxu0 0
        %506 = vmatprep.subr.bf16.mxu0 0
        %507 = vmatpush1.bf16.msra.mxu0 0
        %508 = vmatprep.subr.bf16.mxu0 0
        %509 = vmatpush1.bf16.msra.mxu0 0
        %510 = vmatprep.subr.bf16.mxu0 0
        %511 = vmatpush1.bf16.msra.mxu0 0
        %512 = vmatprep.subr.bf16.mxu0 0
        %513 = vmatpush1.bf16.msra.mxu0 0
        %514 = vmatprep.subr.bf16.mxu0 0
        %515 = vmatpush1.bf16.msra.mxu0 0
        %516 = vmatprep.subr.bf16.mxu0 0
        %517 = vmatpush1.bf16.msra.mxu0 0
        %518 = vmatprep.subr.bf16.mxu0 0
        %519 = vmatpush1.bf16.msra.mxu0 0
        %520 = vmatprep.subr.bf16.mxu0 0
        %521 = vmatpush1.bf16.msra.mxu0 0
        %522 = vmatprep.subr.bf16.mxu0 0
        %523 = vmatpush1.bf16.msra.mxu0 0
        %524 = vmatprep.subr.bf16.mxu0 0
        %525 = vmatpush1.bf16.msra.mxu0 0
        %526 = vmatprep.mubr.bf16.mxu0 0
        %527 = vmatmul.mubr.bf16.gmra.mrb[0].mxu0 %v477
        %v528 = vpop.f32.mrb[0].mxu0
        %v529 = vadd.f32 %v433, %v528
        %v530 = vpop.f32.mrb[0].mxu0
        %v531 = vpop.f32.mrb[0].mxu0
        %v532 = vadd.f32 %v434, %v531
        %v533 = vpop.f32.mrb[0].mxu0
        %534 = vmatprep.mubr.bf16.mxu0 0
        %535 = vmatmul.mubr.bf16.gmra.mrb[0].mxu0 %v480
        %v536 = vpop.f32.mrb[0].mxu0
        %v537 = vadd.f32 %v435, %v536
        %v538 = vpop.f32.mrb[0].mxu0
        %v539 = vpop.f32.mrb[0].mxu0
        %v540 = vadd.f32 %v436, %v539
        %v541 = vpop.f32.mrb[0].mxu0
        %542 = vmatprep.mubr.bf16.mxu0 0
        %543 = vmatmul.mubr.bf16.gmra.mrb[0].mxu0 %v483
        %v544 = vpop.f32.mrb[0].mxu0
        %v545 = vadd.f32 %v437, %v544
        %v546 = vpop.f32.mrb[0].mxu0
        %v547 = vpop.f32.mrb[0].mxu0
        %v548 = vadd.f32 %v438, %v547
        %v549 = vpop.f32.mrb[0].mxu0
        %550 = vmatprep.mubr.bf16.mxu0 0
        %551 = vmatmul.mubr.bf16.gmra.mrb[0].mxu0 %v486
        %v552 = vpop.f32.mrb[0].mxu0
        %v553 = vadd.f32 %v439, %v552
        %v554 = vpop.f32.mrb[0].mxu0
        %v555 = vpop.f32.mrb[0].mxu0
        %v556 = vadd.f32 %v440, %v555
        %v557 = vpop.f32.mrb[0].mxu0
        %558 = vmatprep.mubr.bf16.mxu0 0
        %559 = vmatmul.mubr.bf16.gmra.mrb[0].mxu0 %v489
        %v560 = vpop.f32.mrb[0].mxu0
        %v561 = vadd.f32 %v441, %v560
        %v562 = vpop.f32.mrb[0].mxu0
        %v563 = vpop.f32.mrb[0].mxu0
        %v564 = vadd.f32 %v442, %v563
        %v565 = vpop.f32.mrb[0].mxu0
        %566 = vmatprep.mubr.bf16.mxu0 0
        %567 = vmatmul.mubr.bf16.gmra.mrb[0].mxu0 %v492
        %v568 = vpop.f32.mrb[0].mxu0
        %v569 = vadd.f32 %v443, %v568
        %v570 = vpop.f32.mrb[0].mxu0
        %v571 = vpop.f32.mrb[0].mxu0
        %v572 = vadd.f32 %v444, %v571
        %v573 = vpop.f32.mrb[0].mxu0
        %574 = vdwg.mxu0
        %v575 = vld [vmem:[#allocation3] sm:$0xff]
        %v576 = vld [vmem:[#allocation3 + $0x8] sm:$0xff]
        %v577 = vld [vmem:[#allocation3 + $0x10] sm:$0xff]
        %v578 = vld [vmem:[#allocation3 + $0x18] sm:$0xff]
        %v579 = vld [vmem:[#allocation3 + $0x20] sm:$0xff]
        %v580 = vld [vmem:[#allocation3 + $0x28] sm:$0xff]
        %v581 = vld [vmem:[#allocation3 + $0x30] sm:$0xff]
        %v582 = vld [vmem:[#allocation3 + $0x38] sm:$0xff]
        %v583 = vld [vmem:[#allocation3 + $0x40] sm:$0xff]
        %v584 = vld [vmem:[#allocation3 + $0x48] sm:$0xff]
        %v585 = vld [vmem:[#allocation3 + $0x50] sm:$0xff]
        %v586 = vld [vmem:[#allocation3 + $0x58] sm:$0xff]
        %v587 = vsub.f32 %v529, %v575
        %v588 = vsub.f32 %v532, %v576
        %v589 = vsub.f32 %v537, %v577
        %v590 = vsub.f32 %v540, %v578
        %v591 = vsub.f32 %v545, %v579
        %v592 = vsub.f32 %v548, %v580
        %v593 = vsub.f32 %v553, %v581
        %v594 = vsub.f32 %v556, %v582
        %v595 = vsub.f32 %v561, %v583
        %v596 = vsub.f32 %v564, %v584
        %v597 = vsub.f32 %v569, %v585
        %v598 = vsub.f32 %v572, %v586
        %v599 = vmul.f32 %v587, 0.5714286
        %v600 = vmul.f32 %v588, 0.5714286
        %v601 = vmul.f32 %v589, 0.5714286
        %v602 = vmul.f32 %v590, 0.5714286
        %v603 = vmul.f32 %v591, 0.5714286
        %v604 = vmul.f32 %v592, 0.5714286
        %v605 = vmul.f32 %v593, 0.5714286
        %v606 = vmul.f32 %v594, 0.5714286
        %v607 = vmul.f32 %v595, 0.5714286
        %v608 = vmul.f32 %v596, 0.5714286
        %v609 = vmul.f32 %v597, 0.5714286
        %v610 = vmul.f32 %v598, 0.5714286
        %v611 = vadd.f32 %v575, %v599
        %v612 = vadd.f32 %v576, %v600
        %v613 = vadd.f32 %v577, %v601
        %v614 = vadd.f32 %v578, %v602
        %v615 = vadd.f32 %v579, %v603
        %v616 = vadd.f32 %v580, %v604
        %v617 = vadd.f32 %v581, %v605
        %v618 = vadd.f32 %v582, %v606
        %v619 = vadd.f32 %v583, %v607
        %v620 = vadd.f32 %v584, %v608
        %v621 = vadd.f32 %v585, %v609
        %v622 = vadd.f32 %v586, %v610
        %vm623 = vcmp.ge.f32.partialorder %v611, 1.0
        %vm624 = vcmp.ge.f32.partialorder %v612, 1.0
        %vm625 = vcmp.ge.f32.partialorder %v613, 1.0
        %vm626 = vcmp.ge.f32.partialorder %v614, 1.0
        %vm627 = vcmp.ge.f32.partialorder %v615, 1.0
        %vm628 = vcmp.ge.f32.partialorder %v616, 1.0
        %vm629 = vcmp.ge.f32.partialorder %v617, 1.0
        %vm630 = vcmp.ge.f32.partialorder %v618, 1.0
        %vm631 = vcmp.ge.f32.partialorder %v619, 1.0
        %vm632 = vcmp.ge.f32.partialorder %v620, 1.0
        %vm633 = vcmp.ge.f32.partialorder %v621, 1.0
        %vm634 = vcmp.ge.f32.partialorder %v622, 1.0
        %v635 = vsel %vm623, 1, 0
        %v636 = vsel %vm624, 1, 0
        %v637 = vsel %vm625, 1, 0
        %v638 = vsel %vm626, 1, 0
        %v639 = vsel %vm627, 1, 0
        %v640 = vsel %vm628, 1, 0
        %v641 = vsel %vm629, 1, 0
        %v642 = vsel %vm630, 1, 0
        %v643 = vsel %vm631, 1, 0
        %v644 = vsel %vm632, 1, 0
        %v645 = vsel %vm633, 1, 0
        %v646 = vsel %vm634, 1, 0
        %v647 = vcvt.s32.f32 %v635
        %v648 = vcvt.s32.f32 %v636
        %v649 = vcvt.s32.f32 %v637
        %v650 = vcvt.s32.f32 %v638
        %v651 = vcvt.s32.f32 %v639
        %v652 = vcvt.s32.f32 %v640
        %v653 = vcvt.s32.f32 %v641
        %v654 = vcvt.s32.f32 %v642
        %v655 = vcvt.s32.f32 %v643
        %v656 = vcvt.s32.f32 %v644
        %v657 = vcvt.s32.f32 %v645
        %v658 = vcvt.s32.f32 %v646
        %v659 = vsub.f32 1.0, %v647
        %v660 = vsub.f32 1.0, %v648
        %v661 = vsub.f32 1.0, %v649
        %v662 = vsub.f32 1.0, %v650
        %v663 = vsub.f32 1.0, %v651
        %v664 = vsub.f32 1.0, %v652
        %v665 = vsub.f32 1.0, %v653
        %v666 = vsub.f32 1.0, %v654
        %v667 = vsub.f32 1.0, %v655
        %v668 = vsub.f32 1.0, %v656
        %v669 = vsub.f32 1.0, %v657
        %v670 = vsub.f32 1.0, %v658
        %v671 = vmul.f32 %v611, %v659
        %v672 = vmul.f32 %v612, %v660
        %v673 = vmul.f32 %v613, %v661
        %v674 = vmul.f32 %v614, %v662
        %v675 = vmul.f32 %v615, %v663
        %v676 = vmul.f32 %v616, %v664
        %v677 = vmul.f32 %v617, %v665
        %v678 = vmul.f32 %v618, %v666
        %v679 = vmul.f32 %v619, %v667
        %v680 = vmul.f32 %v620, %v668
        %v681 = vmul.f32 %v621, %v669
        %v682 = vmul.f32 %v622, %v670
        %683 = vst [vmem:[#allocation3] sm:$0xff] %v671
        %684 = vst [vmem:[#allocation3 + $0x8] sm:$0xff] %v672
        %685 = vst [vmem:[#allocation3 + $0x10] sm:$0xff] %v673
        %686 = vst [vmem:[#allocation3 + $0x18] sm:$0xff] %v674
        %687 = vst [vmem:[#allocation3 + $0x20] sm:$0xff] %v675
        %688 = vst [vmem:[#allocation3 + $0x28] sm:$0xff] %v676
        %689 = vst [vmem:[#allocation3 + $0x30] sm:$0xff] %v677
        %690 = vst [vmem:[#allocation3 + $0x38] sm:$0xff] %v678
        %691 = vst [vmem:[#allocation3 + $0x40] sm:$0xff] %v679
        %692 = vst [vmem:[#allocation3 + $0x48] sm:$0xff] %v680
        %693 = vst [vmem:[#allocation3 + $0x50] sm:$0xff] %v681
        %694 = vst [vmem:[#allocation3 + $0x58] sm:$0xff] %v682
        %v695 = vld [vmem:[#allocation11] sm:$0xff]
        %v696 = vld [vmem:[#allocation11 + $0x8] sm:$0xff]
        %v697 = vld [vmem:[#allocation11 + $0x10] sm:$0xff]
        %v698 = vld [vmem:[#allocation11 + $0x18] sm:$0xff]
        %v699 = vld [vmem:[#allocation11 + $0x20] sm:$0xff]
        %v700 = vld [vmem:[#allocation11 + $0x28] sm:$0xff]
        %v701 = vld [vmem:[#allocation11 + $0x30] sm:$0xff]
        %v702 = vld [vmem:[#allocation11 + $0x38] sm:$0xff]
        %v703 = vmul.f32 %v651, %v695
        %v704 = vmul.f32 %v652, %v696
        %v705 = vmul.f32 %v653, %v697
        %v706 = vmul.f32 %v654, %v698
        %v707 = vmul.f32 %v651, %v699
        %v708 = vmul.f32 %v652, %v700
        %v709 = vmul.f32 %v653, %v701
        %v710 = vmul.f32 %v654, %v702
        %v711 = vpack.c.bf16 %v704, %v703
        %v712 = vpack.c.bf16 %v706, %v705
        %v713 = vpack.c.bf16 %v708, %v707
        %v714 = vpack.c.bf16 %v710, %v709
        %v715 = vmul.f32 %v647, %v695
        %v716 = vmul.f32 %v648, %v696
        %v717 = vmul.f32 %v649, %v697
        %v718 = vmul.f32 %v650, %v698
        %v719 = vmul.f32 %v647, %v699
        %v720 = vmul.f32 %v648, %v700
        %v721 = vmul.f32 %v649, %v701
        %v722 = vmul.f32 %v650, %v702
        %v723 = vpack.c.bf16 %v716, %v715
        %v724 = vpack.c.bf16 %v718, %v717
        %v725 = vpack.c.bf16 %v720, %v719
        %v726 = vpack.c.bf16 %v722, %v721
        %v727 = vpack.c.bf16 %v656, %v655
        %v728 = vpack.c.bf16 %v658, %v657
        %729 = vmatprep.subr.bf16.mxu0 0
        %730 = vmatpush1.bf16.xpose.msra.mxu0 %v711
        %731 = vmatprep.subr.bf16.mxu0 0
        %732 = vmatpush1.bf16.xpose.msra.mxu0 %v712
        %733 = vmatprep.subr.bf16.mxu0 0
        %734 = vmatpush1.bf16.xpose.msra.mxu0 %v713
        %735 = vmatprep.subr.bf16.mxu0 0
        %736 = vmatpush1.bf16.xpose.msra.mxu0 %v714
        %737 = vmatprep.subr.bf16.mxu0 0
        %738 = vmatpush1.bf16.xpose.msra.mxu0 0
        %739 = vmatprep.subr.bf16.mxu0 0
        %740 = vmatpush1.bf16.xpose.msra.mxu0 0
        %741 = vmatprep.subr.bf16.mxu0 0
        %742 = vmatpush1.bf16.xpose.msra.mxu0 0
        %743 = vmatprep.subr.bf16.mxu0 0
        %744 = vmatpush1.bf16.xpose.msra.mxu0 0
        %745 = vmatprep.subr.bf16.mxu0 0
        %746 = vmatpush1.bf16.xpose.msra.mxu0 0
        %747 = vmatprep.subr.bf16.mxu0 0
        %748 = vmatpush1.bf16.xpose.msra.mxu0 0
        %749 = vmatprep.subr.bf16.mxu0 0
        %750 = vmatpush1.bf16.xpose.msra.mxu0 0
        %751 = vmatprep.subr.bf16.mxu0 0
        %752 = vmatpush1.bf16.xpose.msra.mxu0 0
        %753 = vmatprep.subr.bf16.mxu0 0
        %754 = vmatpush1.bf16.xpose.msra.mxu0 0
        %755 = vmatprep.subr.bf16.mxu0 0
        %756 = vmatpush1.bf16.xpose.msra.mxu0 0
        %757 = vmatprep.subr.bf16.mxu0 0
        %758 = vmatpush1.bf16.xpose.msra.mxu0 0
        %759 = vmatprep.subr.bf16.mxu0 0
        %760 = vmatpush1.bf16.xpose.msra.mxu0 0
        %761 = vmatprep.mubr.bf16.mxu0 0
        %762 = vmatmul.mubr.bf16.gmra.mrb[0].mxu0 %v727
        %v763 = vpop.f32.mrb[0].mxu0
        %v764 = vadd.f32 0.0, %v763
        %v765 = vpop.f32.mrb[0].mxu0
        %v766 = vpop.f32.mrb[0].mxu0
        %v767 = vadd.f32 0.0, %v766
        %v768 = vpop.f32.mrb[0].mxu0
        %769 = vmatprep.mubr.bf16.mxu0 0
        %770 = vmatmul.mubr.bf16.gmra.mrb[0].mxu0 %v728
        %v771 = vpop.f32.mrb[0].mxu0
        %v772 = vadd.f32 0.0, %v771
        %v773 = vpop.f32.mrb[0].mxu0
        %v774 = vpop.f32.mrb[0].mxu0
        %v775 = vadd.f32 0.0, %v774
        %v776 = vpop.f32.mrb[0].mxu0
        %777 = vdwg.mxu0
        %v778 = vld [vmem:[#allocation13] sm:$0xff]
        %v779 = vld [vmem:[#allocation13 + $0x8] sm:$0xff]
        %v780 = vld [vmem:[#allocation13 + $0x10] sm:$0xff]
        %v781 = vld [vmem:[#allocation13 + $0x18] sm:$0xff]
        %v782 = vmul.f32 %v764, %v778
        %v783 = vmul.f32 %v767, %v779
        %v784 = vmul.f32 %v772, %v780
        %v785 = vmul.f32 %v775, %v781
        %v786 = vpack.c.bf16 %v783, %v782
        %v787 = vpack.c.bf16 %v785, %v784
        %vm788 = vcmask 523264
        %v790 = vsel %vm788, %v786, 0
        %v793 = vsel %vm788, %v787, 0
        %795 = vmatprep.subr.bf16.mxu0 0
        %796 = vmatpush1.bf16.msra.mxu0 %v723
        %797 = vmatprep.subr.bf16.mxu0 0
        %798 = vmatpush1.bf16.msra.mxu0 %v724
        %799 = vmatprep.subr.bf16.mxu0 0
        %800 = vmatpush1.bf16.msra.mxu0 %v725
        %801 = vmatprep.subr.bf16.mxu0 0
        %802 = vmatpush1.bf16.msra.mxu0 %v726
        %803 = vmatprep.subr.bf16.mxu0 0
        %804 = vmatpush1.bf16.msra.mxu0 0
        %805 = vmatprep.subr.bf16.mxu0 0
        %806 = vmatpush1.bf16.msra.mxu0 0
        %807 = vmatprep.subr.bf16.mxu0 0
        %808 = vmatpush1.bf16.msra.mxu0 0
        %809 = vmatprep.subr.bf16.mxu0 0
        %810 = vmatpush1.bf16.msra.mxu0 0
        %811 = vmatprep.subr.bf16.mxu0 0
        %812 = vmatpush1.bf16.msra.mxu0 0
        %813 = vmatprep.subr.bf16.mxu0 0
        %814 = vmatpush1.bf16.msra.mxu0 0
        %815 = vmatprep.subr.bf16.mxu0 0
        %816 = vmatpush1.bf16.msra.mxu0 0
        %817 = vmatprep.subr.bf16.mxu0 0
        %818 = vmatpush1.bf16.msra.mxu0 0
        %819 = vmatprep.subr.bf16.mxu0 0
        %820 = vmatpush1.bf16.msra.mxu0 0
        %821 = vmatprep.subr.bf16.mxu0 0
        %822 = vmatpush1.bf16.msra.mxu0 0
        %823 = vmatprep.subr.bf16.mxu0 0
        %824 = vmatpush1.bf16.msra.mxu0 0
        %825 = vmatprep.subr.bf16.mxu0 0
        %826 = vmatpush1.bf16.msra.mxu0 0
        %827 = vmatprep.mubr.bf16.mxu0 0
        %828 = vmatmul.mubr.bf16.gmra.mrb[0].mxu0 %v790
        %v829 = vpop.f32.mrb[0].mxu0
        %v830 = vadd.f32 0.0, %v829
        %v831 = vpop.f32.mrb[0].mxu0
        %v832 = vpop.f32.mrb[0].mxu0
        %v833 = vadd.f32 0.0, %v832
        %v834 = vpop.f32.mrb[0].mxu0
        %835 = vmatprep.mubr.bf16.mxu0 0
        %836 = vmatmul.mubr.bf16.gmra.mrb[0].mxu0 %v793
        %v837 = vpop.f32.mrb[0].mxu0
        %v838 = vadd.f32 0.0, %v837
        %v839 = vpop.f32.mrb[0].mxu0
        %v840 = vpop.f32.mrb[0].mxu0
        %v841 = vadd.f32 0.0, %v840
        %v842 = vpop.f32.mrb[0].mxu0
        %843 = vdwg.mxu0
        %v844 = vld [vmem:[#allocation4] sm:$0xff]
        %v845 = vld [vmem:[#allocation4 + $0x8] sm:$0xff]
        %v846 = vld [vmem:[#allocation4 + $0x10] sm:$0xff]
        %v847 = vld [vmem:[#allocation4 + $0x18] sm:$0xff]
        %v848 = vsub.f32 %v830, %v844
        %v849 = vsub.f32 %v833, %v845
        %v850 = vsub.f32 %v838, %v846
        %v851 = vsub.f32 %v841, %v847
        %v852 = vmul.f32 %v848, 0.5714286
        %v853 = vmul.f32 %v849, 0.5714286
        %v854 = vmul.f32 %v850, 0.5714286
        %v855 = vmul.f32 %v851, 0.5714286
        %v856 = vadd.f32 %v844, %v852
        %v857 = vadd.f32 %v845, %v853
        %v858 = vadd.f32 %v846, %v854
        %v859 = vadd.f32 %v847, %v855
        %vm860 = vcmp.ge.f32.partialorder %v856, 0.5
        %vm861 = vcmp.ge.f32.partialorder %v857, 0.5
        %vm862 = vcmp.ge.f32.partialorder %v858, 0.5
        %vm863 = vcmp.ge.f32.partialorder %v859, 0.5
        %v864 = vsel %vm860, 1, 0
        %v865 = vsel %vm861, 1, 0
        %v866 = vsel %vm862, 1, 0
        %v867 = vsel %vm863, 1, 0
        %v868 = vcvt.s32.f32 %v864
        %v869 = vcvt.s32.f32 %v865
        %v870 = vcvt.s32.f32 %v866
        %v871 = vcvt.s32.f32 %v867
        %v872 = vsub.f32 1.0, %v868
        %v873 = vsub.f32 1.0, %v869
        %v874 = vsub.f32 1.0, %v870
        %v875 = vsub.f32 1.0, %v871
        %v876 = vmul.f32 %v856, %v872
        %v877 = vmul.f32 %v857, %v873
        %v878 = vmul.f32 %v858, %v874
        %v879 = vmul.f32 %v859, %v875
        %880 = vst [vmem:[#allocation4] sm:$0xff] %v876
        %881 = vst [vmem:[#allocation4 + $0x8] sm:$0xff] %v877
        %882 = vst [vmem:[#allocation4 + $0x10] sm:$0xff] %v878
        %883 = vst [vmem:[#allocation4 + $0x18] sm:$0xff] %v879
        %v884 = vld [vmem:[#allocation5] sm:$0xf]
        %v885 = vld [vmem:[#allocation5 + $0x4] sm:$0xf]
        %v886 = vld [vmem:[#allocation5 + $0x8] sm:$0xf]
        %v887 = vld [vmem:[#allocation5 + $0xc] sm:$0xf]
        %v888 = vpack.c.bf16 %v869, %v868
        %v889 = vpack.c.bf16 %v871, %v870
        %v890 = vld [vmem:[#allocation10] sm:$0xff]
        %v891 = vld [vmem:[#allocation10 + $0x8] sm:$0xff]
        %v892 = vld [vmem:[#allocation10 + $0x10] sm:$0xff]
        %v893 = vld [vmem:[#allocation10 + $0x18] sm:$0xff]
        %v898 = vunpack.c.l.b16 %v884
        %v899 = vunpack.c.l.b16 %v885
        %v900 = vunpack.c.l.b16 %v886
        %v901 = vunpack.c.l.b16 %v887
        %v902 = vpack.c.b16 %v899, %v898
        %v903 = vpack.c.b16 %v901, %v900
        %v905 = vsel %vm475, %v902, 0
        %v908 = vsel %vm475, %v903, 0
        %910 = vmatprep.subr.bf16.mxu0 0
        %911 = vmatpush1.bf16.msra.mxu0 %v888
        %912 = vmatprep.subr.bf16.mxu0 0
        %913 = vmatpush1.bf16.msra.mxu0 %v889
        %914 = vmatprep.subr.bf16.mxu0 0
        %915 = vmatpush1.bf16.msra.mxu0 0
        %916 = vmatprep.subr.bf16.mxu0 0
        %917 = vmatpush1.bf16.msra.mxu0 0
        %918 = vmatprep.subr.bf16.mxu0 0
        %919 = vmatpush1.bf16.msra.mxu0 0
        %920 = vmatprep.subr.bf16.mxu0 0
        %921 = vmatpush1.bf16.msra.mxu0 0
        %922 = vmatprep.subr.bf16.mxu0 0
        %923 = vmatpush1.bf16.msra.mxu0 0
        %924 = vmatprep.subr.bf16.mxu0 0
        %925 = vmatpush1.bf16.msra.mxu0 0
        %926 = vmatprep.subr.bf16.mxu0 0
        %927 = vmatpush1.bf16.msra.mxu0 0
        %928 = vmatprep.subr.bf16.mxu0 0
        %929 = vmatpush1.bf16.msra.mxu0 0
        %930 = vmatprep.subr.bf16.mxu0 0
        %931 = vmatpush1.bf16.msra.mxu0 0
        %932 = vmatprep.subr.bf16.mxu0 0
        %933 = vmatpush1.bf16.msra.mxu0 0
        %934 = vmatprep.subr.bf16.mxu0 0
        %935 = vmatpush1.bf16.msra.mxu0 0
        %936 = vmatprep.subr.bf16.mxu0 0
        %937 = vmatpush1.bf16.msra.mxu0 0
        %938 = vmatprep.subr.bf16.mxu0 0
        %939 = vmatpush1.bf16.msra.mxu0 0
        %940 = vmatprep.subr.bf16.mxu0 0
        %941 = vmatpush1.bf16.msra.mxu0 0
        %942 = vmatprep.mubr.bf16.mxu0 0
        %943 = vmatmul.mubr.bf16.gmra.mrb[0].mxu0 %v905
        %v944 = vpop.f32.mrb[0].mxu0
        %v945 = vadd.f32 %v890, %v944
        %v946 = vpop.f32.mrb[0].mxu0
        %v947 = vpop.f32.mrb[0].mxu0
        %v948 = vadd.f32 %v891, %v947
        %v949 = vpop.f32.mrb[0].mxu0
        %950 = vmatprep.mubr.bf16.mxu0 0
        %951 = vmatmul.mubr.bf16.gmra.mrb[0].mxu0 %v908
        %v952 = vpop.f32.mrb[0].mxu0
        %v953 = vadd.f32 %v892, %v952
        %v954 = vpop.f32.mrb[0].mxu0
        %v955 = vpop.f32.mrb[0].mxu0
        %v956 = vadd.f32 %v893, %v955
        %v957 = vpop.f32.mrb[0].mxu0
        %958 = vdwg.mxu0
        %959 = vst [vmem:[%s344] sm:$0xff] %v945
        %960 = vst [vmem:[%s344 + $0x8] sm:$0xff] %v948
        %961 = vst [vmem:[%s344 + $0x10] sm:$0xff] %v953
        %962 = vst [vmem:[%s344 + $0x18] sm:$0xff] %v956
        %s963 = sand.u32 %s184, 1
        %s964 = scalar_lea.sflag [#allocation7], %s963
        %s965 = sand.u32 %s184, 1
        %s966 = smul.addr %s965, 32
        %s967 = scalar_lea.vmem [#allocation14], %s966
        // Predicated region
        $region73: #{tpu_custom_call.1} parent=47 // pred_check
          %p968 = pneg %p194
        $region74: #{tpu_custom_call.1} parent=47 // pred_check_branch
          %970 = sbr.rel (%p968) target = $region76
        $region75: #{tpu_custom_call.1} parent=47 // pred_region
          %s972 = ssub.s32 512, 512
          %973 = vsyncadd %s964, %s972
          %s974 = smul.addr %s24, 4
          %s975 = smul.addr %s974, 128
          %s976 = scalar_lea.hbm %s7, %s975
          %s977 = sshll.u32 %s967, 4
          %s978 = int_to_ptr.vmem [resolvable:$true] %s977
          %983 = dma.vmem_to_hbm [thread:$0]  %s978, 512, %s976, %s964, 128, 128, 8
        $region76: #{tpu_custom_call.1} parent=47 // pred_fallthru
          _
      $region48: #{tpu_custom_call.1} parent=5 // pred_fallthru
        _
      %p984 = scmp.le.s32.totalorder 2, %s19
      // Predicated region
      $region77: #{tpu_custom_call.1} parent=5 // pred_check
        %p985 = pneg %p984
      $region78: #{tpu_custom_call.1} parent=5 // pred_check_branch
        %987 = sbr.rel (%p985) target = $region80
      $region79: #{tpu_custom_call.1} parent=5 // pred_region
        %s988 = ssub.s32 %s19, 2
        // Predicated region
        $region81: #{tpu_custom_call.1} parent=79 // pred_check
          %p989 = pneg %p200
        $region82: #{tpu_custom_call.1} parent=79 // pred_check_branch
          %991 = sbr.rel (%p989) target = $region84
        $region83: #{tpu_custom_call.1} parent=79 // pred_region
          %s992 = sand.u32 %s185, 1
          %s993 = scalar_lea.sflag [#allocation7], %s992
          %s994 = sand.u32 %s185, 1
          %s995 = smul.addr %s994, 32
          %s996 = scalar_lea.vmem [#allocation14], %s995
          %997 = dma.done %s993, 512
        $region84: #{tpu_custom_call.1} parent=79 // pred_fallthru
          _
      $region80: #{tpu_custom_call.1} parent=5 // pred_fallthru
        _
    $region6: #{tpu_custom_call.1} parent=1 // loop_footer
      %s23 = sadd.s32 1, %s19
    $region7: #{tpu_custom_call.1} parent=1 // loop_footer_branch
      %18 = sbr.rel target = $region3
    $region8: #{tpu_custom_call.1} parent=1 // loop_exit
      _
    %998 = vsyncpa [#allocation6], 1
    %s999 = scalar_lea.sflag [#allocation6], 1
    %1000 = vsyncpa %s999, 1
    %1001 = vsyncpa [#allocation9], 1
    %1002 = vsyncpa [#allocation12], 1
    %1003 = vsyncpa [#allocation7], 1
    %s1004 = scalar_lea.sflag [#allocation7], 1
    %1005 = vsyncpa %s1004, 1

</llo_original>
